<compile_context>
chip_gen: v7x
topology: tpu7x:2x2x1
jax: 0.10.0
libtpu: 0.0.40
codegen_flags: <defaults>
</compile_context>

<pallas_src>
import functools

import jax
import jax.numpy as jnp
from jax import lax
from jax.experimental import pallas as pl
from jax.experimental.pallas import tpu as pltpu


# ---------------------------------------------------------------------------
# VMEM budget / tile sizing
# ---------------------------------------------------------------------------
# Total bytes allowed for the double-buffered input + output blocks of one
# pallas_call (2 input bufs + 2 output bufs).  16 MiB of blocks keeps us well
# inside v7x's 64 MiB physical VMEM (with headroom for f32 temporaries) while
# still giving near-roofline block sizes on v5e/v6e.
_BLOCK_BUDGET_BYTES = 16 * 1024 * 1024
# Scoped-VMEM limit requested from Mosaic (v5e's default is only 16 MiB).
_VMEM_LIMIT_BYTES = 40 * 1024 * 1024


def _pick_tile(bytes_per_row, total_rows, align, cap):
    """Largest tile (multiple of `align`, <= `cap`) such that the 4 in+out
    double-buffered blocks stay under the budget; never larger than the
    align-padded total."""
    t = _BLOCK_BUDGET_BYTES // (4 * max(int(bytes_per_row), 1))
    t = min(t, cap)
    t = (t // align) * align
    t = max(t, align)
    total_aligned = ((total_rows + align - 1) // align) * align
    return min(t, total_aligned)


# ---------------------------------------------------------------------------
# channels_last, general path: rows x (TILE_N, C), normalize over last axis.
# ---------------------------------------------------------------------------
def _ln_channels_last_kernel(x_ref, w_ref, b_ref, o_ref, *, eps):
    x = x_ref[...].astype(jnp.float32)                    # (TILE_N, C)
    mean = jnp.mean(x, axis=-1, keepdims=True)            # (TILE_N, 1)
    xc = x - mean
    var = jnp.mean(xc * xc, axis=-1, keepdims=True)       # biased variance
    inv = lax.rsqrt(var + eps)
    xhat = xc * inv
    w = w_ref[...].astype(jnp.float32)                    # (1, C)
    b = b_ref[...].astype(jnp.float32)                    # (1, C)
    o_ref[...] = (xhat * w + b).astype(o_ref.dtype)


# ---------------------------------------------------------------------------
# channels_last, lane-dense packed path for small C (C < 128, 128 % C == 0).
# R = 128 // C logical rows are packed into one 128-wide lane row; per-row
# sums are recovered with a (128,128) block-diagonal ones matrix on the MXU.
# ---------------------------------------------------------------------------
def _ln_cl_packed_kernel(x_ref, w_ref, b_ref, seg_ref, o_ref, *, c, eps):
    x = x_ref[...].astype(jnp.float32)                    # (TILE, 128)
    seg = seg_ref[...]                                    # (128, 128) f32
    inv_c = 1.0 / c
    # per-segment sum broadcast back across the segment's lanes (MXU).
    mean = jnp.dot(x, seg, preferred_element_type=jnp.float32) * inv_c
    xc = x - mean
    var = jnp.dot(xc * xc, seg, preferred_element_type=jnp.float32) * inv_c
    inv = lax.rsqrt(var + eps)
    w = w_ref[...].astype(jnp.float32)                    # (1, 128) tiled weight
    b = b_ref[...].astype(jnp.float32)                    # (1, 128) tiled bias
    o_ref[...] = (xc * inv * w + b).astype(o_ref.dtype)


def layer_norm_channels_last(x, weight, bias, *, eps=1e-6):
    """x: (..., C); normalize over the last dim. Matches F.layer_norm((C,))."""
    orig_shape = x.shape
    C = orig_shape[-1]
    x2d = x.reshape(-1, C)
    N = x2d.shape[0]
    itemsize = jnp.dtype(x.dtype).itemsize

    if C < 128 and 128 % C == 0:
        # ---- lane-dense packed path ----
        R = 128 // C
        np_rows = -(-N // R)                               # packed rows needed
        tile = _pick_tile(128 * itemsize, np_rows, 8, 1024)
        np_pad = -(-np_rows // tile) * tile
        pad_rows = np_pad * R - N
        if pad_rows:
            x2d = jnp.pad(x2d, ((0, pad_rows), (0, 0)))
        xp = x2d.reshape(np_pad, 128)

        w_t = jnp.tile(weight.reshape(-1), R).reshape(1, 128)
        b_t = jnp.tile(bias.reshape(-1), R).reshape(1, 128)
        lane = jnp.arange(128)
        seg = (lane[:, None] // C == lane[None, :] // C).astype(jnp.float32)

        out = pl.pallas_call(
            functools.partial(_ln_cl_packed_kernel, c=float(C), eps=eps),
            out_shape=jax.ShapeDtypeStruct((np_pad, 128), x.dtype),
            grid_spec=pltpu.PrefetchScalarGridSpec(
                num_scalar_prefetch=0,
                grid=(np_pad // tile,),
                in_specs=[
                    pl.BlockSpec((tile, 128), lambda i: (i, 0)),
                    pl.BlockSpec((1, 128), lambda i: (0, 0)),
                    pl.BlockSpec((1, 128), lambda i: (0, 0)),
                    pl.BlockSpec((128, 128), lambda i: (0, 0)),
                ],
                out_specs=pl.BlockSpec((tile, 128), lambda i: (i, 0)),
            ),
            compiler_params=pltpu.CompilerParams(
                dimension_semantics=("parallel",),
                vmem_limit_bytes=_VMEM_LIMIT_BYTES),
        )(xp, w_t, b_t, seg)

        out = out.reshape(np_pad * R, C)
        if pad_rows:
            out = out[:N]
        return out.reshape(orig_shape)

    # ---- general path (C >= 128 or 128 % C != 0) ----
    tile = _pick_tile(C * itemsize, N, 8, 1024)
    n_pad = -(-N // tile) * tile
    if n_pad != N:
        x2d = jnp.pad(x2d, ((0, n_pad - N), (0, 0)))

    w2d = weight.reshape(1, C)
    b2d = bias.reshape(1, C)

    out = pl.pallas_call(
        functools.partial(_ln_channels_last_kernel, eps=eps),
        out_shape=jax.ShapeDtypeStruct((n_pad, C), x.dtype),
        grid_spec=pltpu.PrefetchScalarGridSpec(
            num_scalar_prefetch=0,
            grid=(n_pad // tile,),
            in_specs=[
                pl.BlockSpec((tile, C), lambda i: (i, 0)),
                pl.BlockSpec((1, C), lambda i: (0, 0)),
                pl.BlockSpec((1, C), lambda i: (0, 0)),
            ],
            out_specs=pl.BlockSpec((tile, C), lambda i: (i, 0)),
        ),
        compiler_params=pltpu.CompilerParams(
            dimension_semantics=("parallel",),
            vmem_limit_bytes=_VMEM_LIMIT_BYTES),
    )(x2d, w2d, b2d)
    if n_pad != N:
        out = out[:N]
    return out.reshape(orig_shape)


# ---------------------------------------------------------------------------
# channels_first kernel: block (1, C, TILE_HW), normalize over channel axis.
# Spatial dim is tiled (lane-dense, bounded VMEM, good pipelining).
# ---------------------------------------------------------------------------
def _ln_channels_first_kernel(x_ref, w_ref, b_ref, o_ref, *, eps):
    x = x_ref[...].astype(jnp.float32)                    # (1, C, TILE_HW)
    u = jnp.mean(x, axis=1, keepdims=True)                # (1, 1, TILE_HW)
    xc = x - u
    s = jnp.mean(xc * xc, axis=1, keepdims=True)          # biased variance
    inv = lax.rsqrt(s + eps)
    xhat = xc * inv
    w = w_ref[...].astype(jnp.float32)[None]              # (1, C, 1)
    b = b_ref[...].astype(jnp.float32)[None]              # (1, C, 1)
    o_ref[...] = (w * xhat + b).astype(o_ref.dtype)
    # TODO(synk): if v7x profiling shows the XLU reduction exposed, move the
    # channel-axis sums onto the MXU via a ones-vector matmul.


def layer_norm_channels_first(x, weight, bias, *, eps=1e-6):
    """x: NCHW (B, C, H, W); normalize over C with per-channel affine."""
    B, C, H, W = x.shape
    HW = H * W
    itemsize = jnp.dtype(x.dtype).itemsize
    x3d = x.reshape(B, C, HW)

    tile_hw = _pick_tile(C * itemsize, HW, 128, 4096)
    hw_pad = -(-HW // tile_hw) * tile_hw
    if hw_pad != HW:
        x3d = jnp.pad(x3d, ((0, 0), (0, 0), (0, hw_pad - HW)))

    w2d = weight.reshape(C, 1)
    b2d = bias.reshape(C, 1)

    out = pl.pallas_call(
        functools.partial(_ln_channels_first_kernel, eps=eps),
        out_shape=jax.ShapeDtypeStruct((B, C, hw_pad), x.dtype),
        grid_spec=pltpu.PrefetchScalarGridSpec(
            num_scalar_prefetch=0,
            grid=(B, hw_pad // tile_hw),
            in_specs=[
                pl.BlockSpec((1, C, tile_hw), lambda b, j: (b, 0, j)),
                pl.BlockSpec((C, 1), lambda b, j: (0, 0)),
                pl.BlockSpec((C, 1), lambda b, j: (0, 0)),
            ],
            out_specs=pl.BlockSpec((1, C, tile_hw), lambda b, j: (b, 0, j)),
        ),
        compiler_params=pltpu.CompilerParams(
            dimension_semantics=("parallel", "parallel"),
            vmem_limit_bytes=_VMEM_LIMIT_BYTES),
    )(x3d, w2d, b2d)
    if hw_pad != HW:
        out = out[:, :, :HW]
    return out.reshape(B, C, H, W)


# ---------------------------------------------------------------------------
# Pure-JAX references (for correctness check)
# ---------------------------------------------------------------------------
def _ref_channels_last(x, w, b, eps):
    mean = jnp.mean(x, axis=-1, keepdims=True)
    var = jnp.mean((x - mean) ** 2, axis=-1, keepdims=True)
    return (x - mean) / jnp.sqrt(var + eps) * w + b


def _ref_channels_first(x, w, b, eps):
    u = jnp.mean(x, axis=1, keepdims=True)
    s = jnp.mean((x - u) ** 2, axis=1, keepdims=True)
    xh = (x - u) / jnp.sqrt(s + eps)
    return w[None, :, None, None] * xh + b[None, :, None, None]


if __name__ == "__main__":
    eps = 1e-6
    key = jax.random.PRNGKey(0)
    k1, k2, k3, k4 = jax.random.split(key, 4)

    # --- channels_last, small C (packed lane-dense path), C = 32 ---
    C = 32
    weight = jnp.ones((C,), jnp.float32)   # exactly as module __init__
    bias = jnp.zeros((C,), jnp.float32)
    x_cl = jax.random.normal(k1, (2, 8, 8, C), jnp.float32)
    out_cl = layer_norm_channels_last(x_cl, weight, bias, eps=eps)
    jax.block_until_ready(out_cl)
    ref_cl = _ref_channels_last(x_cl, weight, bias, eps)
    assert jnp.allclose(out_cl, ref_cl, atol=1e-5, rtol=1e-5), "channels_last (C=32) mismatch"

    # --- channels_last, packed path with awkward row count (needs padding) ---
    x_cl2 = jax.random.normal(k3, (3, 7, 5, C), jnp.float32)
    out_cl2 = layer_norm_channels_last(x_cl2, weight, bias, eps=eps)
    jax.block_until_ready(out_cl2)
    ref_cl2 = _ref_channels_last(x_cl2, weight, bias, eps)
    assert jnp.allclose(out_cl2, ref_cl2, atol=1e-5, rtol=1e-5), "channels_last (padded) mismatch"

    # --- channels_last, general path (C not a divisor of 128), C = 96 ---
    Cg = 96
    wg = jnp.ones((Cg,), jnp.float32)
    bg = jnp.zeros((Cg,), jnp.float32)
    x_cl3 = jax.random.normal(k4, (2, 4, 4, Cg), jnp.float32)
    out_cl3 = layer_norm_channels_last(x_cl3, wg, bg, eps=eps)
    jax.block_until_ready(out_cl3)
    ref_cl3 = _ref_channels_last(x_cl3, wg, bg, eps)
    assert jnp.allclose(out_cl3, ref_cl3, atol=1e-5, rtol=1e-5), "channels_last (C=96) mismatch"

    # --- channels_first: x (B, C, H, W), normalized over C ---
    x_cf = jax.random.normal(k2, (2, C, 8, 8), jnp.float32)
    out_cf = layer_norm_channels_first(x_cf, weight, bias, eps=eps)
    jax.block_until_ready(out_cf)
    ref_cf = _ref_channels_first(x_cf, weight, bias, eps)
    assert jnp.allclose(out_cf, ref_cf, atol=1e-5, rtol=1e-5), "channels_first mismatch"

    print("KERNEL_OK")
</pallas_src>

<mosaic_0001>
module attributes {stable_mosaic.version = 11 : i64} {
  func.func @_ln_cl_packed_kernel(%arg0: i32, %arg1: memref<32x128xf32, #tpu.memory_space<vmem>>, %arg2: memref<1x128xf32, #tpu.memory_space<vmem>>, %arg3: memref<1x128xf32, #tpu.memory_space<vmem>>, %arg4: memref<128x128xf32, #tpu.memory_space<vmem>>, %arg5: memref<32x128xf32, #tpu.memory_space<vmem>>) attributes {dimension_semantics = [#tpu.dimension_semantics<parallel>], iteration_bounds = array<i64: 1>, scalar_prefetch = 0 : i64, scratch_operands = 0 : i64, tpu.core_type = #tpu.core_type<tc>, window_params = [{transform_indices = @transform_0, window_bounds = array<i64: 32, 128>}, {pipeline_mode = #tpu.pipeline_mode<synchronous>, transform_indices = @transform_1, window_bounds = array<i64: 1, 128>}, {pipeline_mode = #tpu.pipeline_mode<synchronous>, transform_indices = @transform_2, window_bounds = array<i64: 1, 128>}, {pipeline_mode = #tpu.pipeline_mode<synchronous>, transform_indices = @transform_3, window_bounds = array<i64: 128, 128>}, {transform_indices = @transform_4, window_bounds = array<i64: 32, 128>}]} {
    %c0 = arith.constant 0 : index
    %c0_0 = arith.constant 0 : index
    %0 = vector.load %arg1[%c0, %c0_0] : memref<32x128xf32, #tpu.memory_space<vmem>>, vector<32x128xf32>
    %c0_1 = arith.constant 0 : index
    %c0_2 = arith.constant 0 : index
    %1 = vector.load %arg4[%c0_1, %c0_2] : memref<128x128xf32, #tpu.memory_space<vmem>>, vector<128x128xf32>
    %cst = arith.constant dense<0.000000e+00> : vector<32x128xf32>
    %2 = tpu.matmul %0, %1, %cst {dimension_numbers = #tpu.dot_dimension_numbers<[1], [0], [0], [1], [0, 0, 1, 1], [], []>} : vector<32x128xf32>, vector<128x128xf32>, vector<32x128xf32> -> vector<32x128xf32>
    %cst_3 = arith.constant 3.125000e-02 : f32
    %3 = vector.broadcast %cst_3 : f32 to vector<32x128xf32>
    %4 = arith.mulf %2, %3 : vector<32x128xf32>
    %5 = arith.subf %0, %4 : vector<32x128xf32>
    %6 = arith.mulf %5, %5 : vector<32x128xf32>
    %cst_4 = arith.constant dense<0.000000e+00> : vector<32x128xf32>
    %7 = tpu.matmul %6, %1, %cst_4 {dimension_numbers = #tpu.dot_dimension_numbers<[1], [0], [0], [1], [0, 0, 1, 1], [], []>} : vector<32x128xf32>, vector<128x128xf32>, vector<32x128xf32> -> vector<32x128xf32>
    %cst_5 = arith.constant 3.125000e-02 : f32
    %8 = vector.broadcast %cst_5 : f32 to vector<32x128xf32>
    %9 = arith.mulf %7, %8 : vector<32x128xf32>
    %cst_6 = arith.constant 9.99999997E-7 : f32
    %10 = vector.broadcast %cst_6 : f32 to vector<32x128xf32>
    %11 = arith.addf %9, %10 : vector<32x128xf32>
    %12 = math.rsqrt %11 : vector<32x128xf32>
    %c0_7 = arith.constant 0 : index
    %c0_8 = arith.constant 0 : index
    %13 = vector.load %arg2[%c0_7, %c0_8] : memref<1x128xf32, #tpu.memory_space<vmem>>, vector<1x128xf32>
    %c0_9 = arith.constant 0 : index
    %c0_10 = arith.constant 0 : index
    %14 = vector.load %arg3[%c0_9, %c0_10] : memref<1x128xf32, #tpu.memory_space<vmem>>, vector<1x128xf32>
    %15 = arith.mulf %5, %12 : vector<32x128xf32>
    %16 = vector.broadcast %13 : vector<1x128xf32> to vector<32x128xf32>
    %17 = arith.mulf %15, %16 : vector<32x128xf32>
    %18 = vector.broadcast %14 : vector<1x128xf32> to vector<32x128xf32>
    %19 = arith.addf %17, %18 : vector<32x128xf32>
    %c0_11 = arith.constant 0 : index
    %c0_12 = arith.constant 0 : index
    %20 = vector.load %arg5[%c0_11, %c0_12] : memref<32x128xf32, #tpu.memory_space<vmem>>, vector<32x128xf32>
    tpu.vector_store %arg5[%c0_11, %c0_12], %19 {strides = array<i32>} : memref<32x128xf32, #tpu.memory_space<vmem>>, vector<32x128xf32>,
    return
  }
  func.func @transform_0(%arg0: i32) -> (i32, i32) {
    %c0_i32 = arith.constant 0 : i32
    %c0_i32_0 = arith.constant 0 : i32
    return %arg0, %c0_i32 : i32, i32
  }
  func.func @transform_1(%arg0: i32) -> (i32, i32) {
    %c0_i32 = arith.constant 0 : i32
    %c0_i32_0 = arith.constant 0 : i32
    %c0_i32_1 = arith.constant 0 : i32
    return %c0_i32, %c0_i32_0 : i32, i32
  }
  func.func @transform_2(%arg0: i32) -> (i32, i32) {
    %c0_i32 = arith.constant 0 : i32
    %c0_i32_0 = arith.constant 0 : i32
    %c0_i32_1 = arith.constant 0 : i32
    return %c0_i32, %c0_i32_0 : i32, i32
  }
  func.func @transform_3(%arg0: i32) -> (i32, i32) {
    %c0_i32 = arith.constant 0 : i32
    %c0_i32_0 = arith.constant 0 : i32
    %c0_i32_1 = arith.constant 0 : i32
    return %c0_i32, %c0_i32_0 : i32, i32
  }
  func.func @transform_4(%arg0: i32) -> (i32, i32) {
    %c0_i32 = arith.constant 0 : i32
    %c0_i32_0 = arith.constant 0 : i32
    return %arg0, %c0_i32 : i32, i32
  }
}

</mosaic_0001>

<llo_original>
// kernel: tpu_custom_call.1
$region0: #{tpu_custom_call.1}
  #allocation0 [shape = 'u32[]', space=smem, size = 0x4, offset = 0x4, fixed_abs, tag = 'smem constant byte address 0x4 - core index']
  #allocation1 [shape = 'u32[144,128]{1,0:T(1,128)}', space=vmem, size = 0x12000, scoped, tag = 'internal scratch']
  %s0 = inlined_call_operand.hbm [shape: f32[32,128], index: 0, kind: input, shape index: {}]
  %s1 = inlined_call_operand.vmem [shape: f32[1,128], index: 1, kind: input, shape index: {}]
  %s2 = inlined_call_operand.vmem [shape: f32[1,128], index: 2, kind: input, shape index: {}]
  %s3 = inlined_call_operand.hbm [shape: f32[128,128], index: 3, kind: input, shape index: {}]
  %s4 = inlined_call_operand.hbm [shape: f32[32,128], index: 4, kind: output, shape index: {}]
  %s5 = sld [smem:[#allocation0]]
  $region34: #{tpu_custom_call.1} parent=0
    _
  %s7 = ssub.s32 1, %s5
  %s8 = scalar_select 0, %s7, %s5
  $region1: #{tpu_custom_call.1} parent=0
    #allocation2 [shape = 'u8[16384]{0}', space=vmem, size = 0x4000, scoped, tag = 'input window, operand 0, single buffered']
    #allocation3 [shape = 's32[1]{0}', space=sflag, size = 0x4, scoped, tag = 'scoped memory for tpu_custom_call.1']
    #allocation4 [shape = 's32[1]{0}', space=sflag, size = 0x4, scoped, tag = 'scoped memory for tpu_custom_call.1']
    #allocation5 [shape = 'u8[65536]{0}', space=vmem, size = 0x10000, scoped, tag = 'input window, operand 3, single buffered']
    #allocation6 [shape = 's32[1]{0}', space=sflag, size = 0x4, scoped, tag = 'scoped memory for tpu_custom_call.1']
    #allocation7 [shape = 'u8[16384]{0}', space=vmem, size = 0x4000, scoped, tag = 'output window, operand 0, single buffered']
    %9 = vsyncpa [#allocation3], 0
    %10 = vsyncpa [#allocation6], 0
    %11 = vsyncpa [#allocation4], 0
    // Predicated region
    $region2: #{tpu_custom_call.1} parent=1 // pred_check
      _
    $region3: #{tpu_custom_call.1} parent=1 // pred_check_branch
      %13 = sbr.rel (0) target = $region5
    $region4: #{tpu_custom_call.1} parent=1 // pred_region
      %s15 = ssub.s32 512, 512
      %16 = vsyncadd [#allocation3], %s15
      %s17 = sshll.u32 [#allocation2], 4
      %s18 = int_to_ptr.vmem [resolvable:$true] %s17
      %23 = dma.hbm_to_vmem [thread:$0]  %s0, 512, %s18, [#allocation3], 128, 128, 8
    $region5: #{tpu_custom_call.1} parent=1 // pred_fallthru
      _
    // Predicated region
    $region6: #{tpu_custom_call.1} parent=1 // pred_check
      _
    $region7: #{tpu_custom_call.1} parent=1 // pred_check_branch
      %25 = sbr.rel (0) target = $region9
    $region8: #{tpu_custom_call.1} parent=1 // pred_region
      _
    $region9: #{tpu_custom_call.1} parent=1 // pred_fallthru
      _
    // Predicated region
    $region10: #{tpu_custom_call.1} parent=1 // pred_check
      _
    $region11: #{tpu_custom_call.1} parent=1 // pred_check_branch
      %27 = sbr.rel (0) target = $region13
    $region12: #{tpu_custom_call.1} parent=1 // pred_region
      _
    $region13: #{tpu_custom_call.1} parent=1 // pred_fallthru
      _
    // Predicated region
    $region14: #{tpu_custom_call.1} parent=1 // pred_check
      _
    $region15: #{tpu_custom_call.1} parent=1 // pred_check_branch
      %29 = sbr.rel (0) target = $region17
    $region16: #{tpu_custom_call.1} parent=1 // pred_region
      %s31 = ssub.s32 2048, 2048
      %32 = vsyncadd [#allocation6], %s31
      %s33 = sshll.u32 [#allocation5], 4
      %s34 = int_to_ptr.vmem [resolvable:$true] %s33
      %39 = dma.hbm_to_vmem [thread:$0]  %s3, 2048, %s34, [#allocation6], 128, 128, 8
    $region17: #{tpu_custom_call.1} parent=1 // pred_fallthru
      _
    // Predicated region
    $region18: #{tpu_custom_call.1} parent=1 // pred_check
      _
    $region19: #{tpu_custom_call.1} parent=1 // pred_check_branch
      %41 = sbr.rel (0) target = $region21
    $region20: #{tpu_custom_call.1} parent=1 // pred_region
      %42 = dma.done [#allocation3], 512
    $region21: #{tpu_custom_call.1} parent=1 // pred_fallthru
      _
    // Predicated region
    $region22: #{tpu_custom_call.1} parent=1 // pred_check
      _
    $region23: #{tpu_custom_call.1} parent=1 // pred_check_branch
      %44 = sbr.rel (0) target = $region25
    $region24: #{tpu_custom_call.1} parent=1 // pred_region
      %45 = dma.done [#allocation6], 2048
    $region25: #{tpu_custom_call.1} parent=1 // pred_fallthru
      _
    %v46 = vld [vmem:[#allocation2] sm:$0xff]
    %v47 = vld [vmem:[#allocation2 + $0x8] sm:$0xff]
    %v48 = vld [vmem:[#allocation2 + $0x10] sm:$0xff]
    %v49 = vld [vmem:[#allocation2 + $0x18] sm:$0xff]
    %v50 = vld [vmem:[#allocation5] sm:$0xff]
    %v51 = vld [vmem:[#allocation5 + $0x8] sm:$0xff]
    %v52 = vld [vmem:[#allocation5 + $0x10] sm:$0xff]
    %v53 = vld [vmem:[#allocation5 + $0x18] sm:$0xff]
    %v54 = vld [vmem:[#allocation5 + $0x20] sm:$0xff]
    %v55 = vld [vmem:[#allocation5 + $0x28] sm:$0xff]
    %v56 = vld [vmem:[#allocation5 + $0x30] sm:$0xff]
    %v57 = vld [vmem:[#allocation5 + $0x38] sm:$0xff]
    %v58 = vld [vmem:[#allocation5 + $0x40] sm:$0xff]
    %v59 = vld [vmem:[#allocation5 + $0x48] sm:$0xff]
    %v60 = vld [vmem:[#allocation5 + $0x50] sm:$0xff]
    %v61 = vld [vmem:[#allocation5 + $0x58] sm:$0xff]
    %v62 = vld [vmem:[#allocation5 + $0x60] sm:$0xff]
    %v63 = vld [vmem:[#allocation5 + $0x68] sm:$0xff]
    %v64 = vld [vmem:[#allocation5 + $0x70] sm:$0xff]
    %v65 = vld [vmem:[#allocation5 + $0x78] sm:$0xff]
    %66 = vmatprep.subr.mxu0 0.0
    %67 = vmatpush1.msra.mxu0 %v50
    %68 = vmatprep.subr.mxu0 0.0
    %69 = vmatpush1.msra.mxu0 %v51
    %70 = vmatprep.subr.mxu0 0.0
    %71 = vmatpush1.msra.mxu0 %v52
    %72 = vmatprep.subr.mxu0 0.0
    %73 = vmatpush1.msra.mxu0 %v53
    %74 = vmatprep.subr.mxu0 0.0
    %75 = vmatpush1.msra.mxu0 %v54
    %76 = vmatprep.subr.mxu0 0.0
    %77 = vmatpush1.msra.mxu0 %v55
    %78 = vmatprep.subr.mxu0 0.0
    %79 = vmatpush1.msra.mxu0 %v56
    %80 = vmatprep.subr.mxu0 0.0
    %81 = vmatpush1.msra.mxu0 %v57
    %82 = vmatprep.subr.mxu0 0.0
    %83 = vmatpush1.msra.mxu0 %v58
    %84 = vmatprep.subr.mxu0 0.0
    %85 = vmatpush1.msra.mxu0 %v59
    %86 = vmatprep.subr.mxu0 0.0
    %87 = vmatpush1.msra.mxu0 %v60
    %88 = vmatprep.subr.mxu0 0.0
    %89 = vmatpush1.msra.mxu0 %v61
    %90 = vmatprep.subr.mxu0 0.0
    %91 = vmatpush1.msra.mxu0 %v62
    %92 = vmatprep.subr.mxu0 0.0
    %93 = vmatpush1.msra.mxu0 %v63
    %94 = vmatprep.subr.mxu0 0.0
    %95 = vmatpush1.msra.mxu0 %v64
    %96 = vmatprep.subr.mxu0 0.0
    %97 = vmatpush1.msra.mxu0 %v65
    %98 = vmatprep.subr.mxu0 0.0
    %99 = vmatpush1.msra.mxu0 0.0
    %100 = vmatprep.subr.mxu0 0.0
    %101 = vmatpush1.msra.mxu0 0.0
    %102 = vmatprep.subr.mxu0 0.0
    %103 = vmatpush1.msra.mxu0 0.0
    %104 = vmatprep.subr.mxu0 0.0
    %105 = vmatpush1.msra.mxu0 0.0
    %106 = vmatprep.subr.mxu0 0.0
    %107 = vmatpush1.msra.mxu0 0.0
    %108 = vmatprep.subr.mxu0 0.0
    %109 = vmatpush1.msra.mxu0 0.0
    %110 = vmatprep.subr.mxu0 0.0
    %111 = vmatpush1.msra.mxu0 0.0
    %112 = vmatprep.subr.mxu0 0.0
    %113 = vmatpush1.msra.mxu0 0.0
    %114 = vmatprep.subr.mxu0 0.0
    %115 = vmatpush1.msra.mxu0 0.0
    %116 = vmatprep.subr.mxu0 0.0
    %117 = vmatpush1.msra.mxu0 0.0
    %118 = vmatprep.subr.mxu0 0.0
    %119 = vmatpush1.msra.mxu0 0.0
    %120 = vmatprep.subr.mxu0 0.0
    %121 = vmatpush1.msra.mxu0 0.0
    %122 = vmatprep.subr.mxu0 0.0
    %123 = vmatpush1.msra.mxu0 0.0
    %124 = vmatprep.subr.mxu0 0.0
    %125 = vmatpush1.msra.mxu0 0.0
    %126 = vmatprep.subr.mxu0 0.0
    %127 = vmatpush1.msra.mxu0 0.0
    %128 = vmatprep.subr.mxu0 0.0
    %129 = vmatpush1.msra.mxu0 0.0
    %130 = vmatprep.mubr.f32.mxu0 0.0
    %131 = vmatmul.mubr.f32.gmra.mrb[0].mxu0 %v46
    %v132 = vpop.f32.mrb[0].mxu0
    %v133 = vadd.f32 0.0, %v132
    %v134 = vpop.f32.mrb[0].mxu0
    %135 = vmatprep.mubr.f32.mxu0 0.0
    %136 = vmatmul.mubr.f32.gmra.mrb[0].mxu0 %v47
    %v137 = vpop.f32.mrb[0].mxu0
    %v138 = vadd.f32 0.0, %v137
    %v139 = vpop.f32.mrb[0].mxu0
    %140 = vmatprep.mubr.f32.mxu0 0.0
    %141 = vmatmul.mubr.f32.gmra.mrb[0].mxu0 %v48
    %v142 = vpop.f32.mrb[0].mxu0
    %v143 = vadd.f32 0.0, %v142
    %v144 = vpop.f32.mrb[0].mxu0
    %145 = vmatprep.mubr.f32.mxu0 0.0
    %146 = vmatmul.mubr.f32.gmra.mrb[0].mxu0 %v49
    %v147 = vpop.f32.mrb[0].mxu0
    %v148 = vadd.f32 0.0, %v147
    %v149 = vpop.f32.mrb[0].mxu0
    %150 = vdwg.mxu0
    %v151 = vmul.f32 %v133, 0.03125
    %v152 = vmul.f32 %v138, 0.03125
    %v153 = vmul.f32 %v143, 0.03125
    %v154 = vmul.f32 %v148, 0.03125
    %v155 = vsub.f32 %v46, %v151
    %v156 = vsub.f32 %v47, %v152
    %v157 = vsub.f32 %v48, %v153
    %v158 = vsub.f32 %v49, %v154
    %v159 = vmul.f32 %v155, %v155
    %v160 = vmul.f32 %v156, %v156
    %v161 = vmul.f32 %v157, %v157
    %v162 = vmul.f32 %v158, %v158
    %163 = vmatprep.subr.mxu0 0.0
    %164 = vmatpush1.msra.mxu0 %v50
    %165 = vmatprep.subr.mxu0 0.0
    %166 = vmatpush1.msra.mxu0 %v51
    %167 = vmatprep.subr.mxu0 0.0
    %168 = vmatpush1.msra.mxu0 %v52
    %169 = vmatprep.subr.mxu0 0.0
    %170 = vmatpush1.msra.mxu0 %v53
    %171 = vmatprep.subr.mxu0 0.0
    %172 = vmatpush1.msra.mxu0 %v54
    %173 = vmatprep.subr.mxu0 0.0
    %174 = vmatpush1.msra.mxu0 %v55
    %175 = vmatprep.subr.mxu0 0.0
    %176 = vmatpush1.msra.mxu0 %v56
    %177 = vmatprep.subr.mxu0 0.0
    %178 = vmatpush1.msra.mxu0 %v57
    %179 = vmatprep.subr.mxu0 0.0
    %180 = vmatpush1.msra.mxu0 %v58
    %181 = vmatprep.subr.mxu0 0.0
    %182 = vmatpush1.msra.mxu0 %v59
    %183 = vmatprep.subr.mxu0 0.0
    %184 = vmatpush1.msra.mxu0 %v60
    %185 = vmatprep.subr.mxu0 0.0
    %186 = vmatpush1.msra.mxu0 %v61
    %187 = vmatprep.subr.mxu0 0.0
    %188 = vmatpush1.msra.mxu0 %v62
    %189 = vmatprep.subr.mxu0 0.0
    %190 = vmatpush1.msra.mxu0 %v63
    %191 = vmatprep.subr.mxu0 0.0
    %192 = vmatpush1.msra.mxu0 %v64
    %193 = vmatprep.subr.mxu0 0.0
    %194 = vmatpush1.msra.mxu0 %v65
    %195 = vmatprep.subr.mxu0 0.0
    %196 = vmatpush1.msra.mxu0 0.0
    %197 = vmatprep.subr.mxu0 0.0
    %198 = vmatpush1.msra.mxu0 0.0
    %199 = vmatprep.subr.mxu0 0.0
    %200 = vmatpush1.msra.mxu0 0.0
    %201 = vmatprep.subr.mxu0 0.0
    %202 = vmatpush1.msra.mxu0 0.0
    %203 = vmatprep.subr.mxu0 0.0
    %204 = vmatpush1.msra.mxu0 0.0
    %205 = vmatprep.subr.mxu0 0.0
    %206 = vmatpush1.msra.mxu0 0.0
    %207 = vmatprep.subr.mxu0 0.0
    %208 = vmatpush1.msra.mxu0 0.0
    %209 = vmatprep.subr.mxu0 0.0
    %210 = vmatpush1.msra.mxu0 0.0
    %211 = vmatprep.subr.mxu0 0.0
    %212 = vmatpush1.msra.mxu0 0.0
    %213 = vmatprep.subr.mxu0 0.0
    %214 = vmatpush1.msra.mxu0 0.0
    %215 = vmatprep.subr.mxu0 0.0
    %216 = vmatpush1.msra.mxu0 0.0
    %217 = vmatprep.subr.mxu0 0.0
    %218 = vmatpush1.msra.mxu0 0.0
    %219 = vmatprep.subr.mxu0 0.0
    %220 = vmatpush1.msra.mxu0 0.0
    %221 = vmatprep.subr.mxu0 0.0
    %222 = vmatpush1.msra.mxu0 0.0
    %223 = vmatprep.subr.mxu0 0.0
    %224 = vmatpush1.msra.mxu0 0.0
    %225 = vmatprep.subr.mxu0 0.0
    %226 = vmatpush1.msra.mxu0 0.0
    %227 = vmatprep.mubr.f32.mxu0 0.0
    %228 = vmatmul.mubr.f32.gmra.mrb[0].mxu0 %v159
    %v229 = vpop.f32.mrb[0].mxu0
    %v230 = vadd.f32 0.0, %v229
    %v231 = vpop.f32.mrb[0].mxu0
    %232 = vmatprep.mubr.f32.mxu0 0.0
    %233 = vmatmul.mubr.f32.gmra.mrb[0].mxu0 %v160
    %v234 = vpop.f32.mrb[0].mxu0
    %v235 = vadd.f32 0.0, %v234
    %v236 = vpop.f32.mrb[0].mxu0
    %237 = vmatprep.mubr.f32.mxu0 0.0
    %238 = vmatmul.mubr.f32.gmra.mrb[0].mxu0 %v161
    %v239 = vpop.f32.mrb[0].mxu0
    %v240 = vadd.f32 0.0, %v239
    %v241 = vpop.f32.mrb[0].mxu0
    %242 = vmatprep.mubr.f32.mxu0 0.0
    %243 = vmatmul.mubr.f32.gmra.mrb[0].mxu0 %v162
    %v244 = vpop.f32.mrb[0].mxu0
    %v245 = vadd.f32 0.0, %v244
    %v246 = vpop.f32.mrb[0].mxu0
    %247 = vdwg.mxu0
    %v248 = vmul.f32 %v230, 0.03125
    %v249 = vmul.f32 %v235, 0.03125
    %v250 = vmul.f32 %v240, 0.03125
    %v251 = vmul.f32 %v245, 0.03125
    %v252 = vadd.f32 %v248, 1e-06
    %v253 = vadd.f32 %v249, 1e-06
    %v254 = vadd.f32 %v250, 1e-06
    %v255 = vadd.f32 %v251, 1e-06
    %v256 = vrsqrt.pop %v252
    %v257 = vrsqrt.pop %v253
    %v258 = vrsqrt.pop %v254
    %v259 = vrsqrt.pop %v255
    %v260 = vld [vmem:[%s1] sm:$0x1]
    %v261 = vld [vmem:[%s2] sm:$0x1]
    %v262 = vmul.f32 %v155, %v256
    %v263 = vmul.f32 %v156, %v257
    %v264 = vmul.f32 %v157, %v258
    %v265 = vmul.f32 %v158, %v259
    %v267 = vlaneseq
    %v268 = vshrl.u32 %v267, 7
    %v269 = vsub.s32 0, %v268
    %v270 = vrot.slane %v260, %v269
    %v272 = vmul.f32 %v262, %v270
    %v273 = vmul.f32 %v263, %v270
    %v274 = vmul.f32 %v264, %v270
    %v275 = vmul.f32 %v265, %v270
    %v277 = vlaneseq
    %v278 = vshrl.u32 %v277, 7
    %v279 = vsub.s32 0, %v278
    %v280 = vrot.slane %v261, %v279
    %v282 = vadd.f32 %v272, %v280
    %v283 = vadd.f32 %v273, %v280
    %v284 = vadd.f32 %v274, %v280
    %v285 = vadd.f32 %v275, %v280
    %286 = vst [vmem:[#allocation7] sm:$0xff] %v282
    %287 = vst [vmem:[#allocation7 + $0x8] sm:$0xff] %v283
    %288 = vst [vmem:[#allocation7 + $0x10] sm:$0xff] %v284
    %289 = vst [vmem:[#allocation7 + $0x18] sm:$0xff] %v285
    // Predicated region
    $region26: #{tpu_custom_call.1} parent=1 // pred_check
      _
    $region27: #{tpu_custom_call.1} parent=1 // pred_check_branch
      %291 = sbr.rel (0) target = $region29
    $region28: #{tpu_custom_call.1} parent=1 // pred_region
      %s293 = ssub.s32 512, 512
      %294 = vsyncadd [#allocation4], %s293
      %s295 = sshll.u32 [#allocation7], 4
      %s296 = int_to_ptr.vmem [resolvable:$true] %s295
      %301 = dma.vmem_to_hbm [thread:$0]  %s296, 512, %s4, [#allocation4], 128, 128, 8
    $region29: #{tpu_custom_call.1} parent=1 // pred_fallthru
      _
    // Predicated region
    $region30: #{tpu_custom_call.1} parent=1 // pred_check
      _
    $region31: #{tpu_custom_call.1} parent=1 // pred_check_branch
      %303 = sbr.rel (0) target = $region33
    $region32: #{tpu_custom_call.1} parent=1 // pred_region
      %304 = dma.done [#allocation4], 512
    $region33: #{tpu_custom_call.1} parent=1 // pred_fallthru
      _
    %305 = vsyncpa [#allocation3], 1
    %306 = vsyncpa [#allocation6], 1
    %307 = vsyncpa [#allocation4], 1

</llo_original>
